<compile_context>
chip_gen: v7x
topology: tpu7x:2x2x1
jax: 0.10.0
libtpu: 0.0.40
codegen_flags: <defaults>
</compile_context>

<pallas_src>
import jax
import jax.numpy as jnp
from jax.experimental import pallas as pl
from jax.experimental.pallas import tpu as pltpu

# ----------------------------- configuration -----------------------------
N, C = 2, 8                  # batch, channels (in_channels == out_channels)
H, W = 16, 16                # input spatial size
h, w = 8, 8                  # partition size (module's h, w)
S = 2                        # num_sharesets
REPARAM_K = (1, 3)           # reparam_conv_k
GP_REDUCE = 4                # globalperceptron_reduce
C_INT = C // GP_REDUCE       # GlobalPerceptron internal neurons
HP, WP = H // h, W // w      # h_parts, w_parts
HW = h * w                   # 64   (per-partition local size)
HWF = H * W                  # 256  (flat lane width of the kernel)
NC = N * C                   # 16   (kernel rows)
NCI = N * C_INT              # 4
B2 = N * HP * WP * (C // S)  # 32   (rows fed to the grouped fc3 in the reference)
EPS = 1e-5

assert H % h == 0 and W % w == 0 and C % S == 0 and C % GP_REDUCE == 0
# The folded permutation / weight construction below is specialized to configs where the
# number of channel groups equals the number of spatial partitions (true for this module
# config); the pure-JAX reference below handles the generic semantics and is asserted against.
assert C == S * HP * WP

# constant-slab lane layout (all sub-(8,128) operands packed into one (SLAB_R, 128) array)
SLAB_R = max(8, NC)
L_W1 = 0                     # (NCI, NC)   GP fc1, block-diagonal per batch
L_B1 = NC                    # (NCI, 1)
L_W2 = 32                    # (NC, NCI)   GP fc2, block-diagonal per batch
L_B2 = L_W2 + NCI            # (NC, 1)
L_MASK = 64                  # (NC, S)     0/1 shareset row masks
L_BIAS = L_MASK + S          # (NC, 1)     folded BN bias column
assert L_BIAS < 128


# ----------------------------- the fused Pallas kernel -----------------------------
def _repmlp_fused_kernel(xp_ref, xf_ref, weff_ref, slab_ref, o_ref):
    # ---- big lane-dense MXU matmuls first (overlap under the GP latency chain) ----
    # xp_ref rows are already in output (n, c_out) order; lanes are flat H*W spatial.
    xp = xp_ref[...]                                                          # (NC, 256)
    ys = [jnp.dot(xp, weff_ref[s], preferred_element_type=jnp.float32)
          for s in range(S)]                                                  # S x (NC, 256)

    # ---- GlobalPerceptron: adaptive_avg_pool2d -> fc1 -> relu -> fc2 -> sigmoid ----
    # xf_ref is the un-permuted flat view, rows = (n, c); pooling is a lane reduction (XLU).
    pooled = jnp.sum(xf_ref[...], axis=1, keepdims=True) * (1.0 / HWF)        # (NC, 1)
    w1b = slab_ref[0:NCI, L_W1:L_W1 + NC]                                     # (NCI, NC)
    b1 = slab_ref[0:NCI, L_B1:L_B1 + 1]                                       # (NCI, 1)
    w2b = slab_ref[0:NC, L_W2:L_W2 + NCI]                                     # (NC, NCI)
    b2 = slab_ref[0:NC, L_B2:L_B2 + 1]                                        # (NC, 1)
    h1 = jnp.maximum(jnp.dot(w1b, pooled, preferred_element_type=jnp.float32) + b1, 0.0)
    gvec = jax.nn.sigmoid(
        jnp.dot(w2b, h1, preferred_element_type=jnp.float32) + b2)            # (NC, 1)

    # ---- combine sharesets (0/1 sublane masks), add folded bias, apply global_vec ----
    y = ys[0] * slab_ref[0:NC, L_MASK:L_MASK + 1]
    for s in range(1, S):
        y = y + ys[s] * slab_ref[0:NC, L_MASK + s:L_MASK + s + 1]
    o_ref[...] = (y + slab_ref[0:NC, L_BIAS:L_BIAS + 1]) * gvec


def repmlp_fused_call(xperm, xflat, weff, slab):
    flops = 2 * S * NC * HWF * HWF + 4 * NC * HWF                 # matmuls + elementwise
    bytes_accessed = 4 * (xperm.size + xflat.size + weff.size + slab.size + NC * HWF)
    return pl.pallas_call(
        _repmlp_fused_kernel,
        out_shape=jax.ShapeDtypeStruct((NC, HWF), jnp.float32),
        in_specs=[
            pl.BlockSpec(memory_space=pltpu.MemorySpace.VMEM),    # permuted activations
            pl.BlockSpec(memory_space=pltpu.MemorySpace.VMEM),    # flat activations (pooling)
            pl.BlockSpec(memory_space=pltpu.MemorySpace.VMEM),    # folded (S, 256, 256) weight
            pl.BlockSpec(memory_space=pltpu.MemorySpace.VMEM),    # packed constant slab
        ],
        out_specs=pl.BlockSpec(memory_space=pltpu.MemorySpace.VMEM),
        cost_estimate=pl.CostEstimate(
            flops=int(flops), transcendentals=2 * NC, bytes_accessed=int(bytes_accessed)),
    )(xperm, xflat, weff, slab)


# ----------------------------- parameter plumbing (plain JAX, trace-time) -----------------------------
def bn_affine(gamma, beta, mean, var, eps=EPS):
    scale = gamma / jnp.sqrt(var + eps)
    return scale, beta - mean * scale


def conv_to_fc(kernel):
    """kernel: (S, 1, k, k) depthwise conv weight -> (S, HW, HW) with M[s] @ x_vec == conv(x)."""
    k = kernel.shape[-1]
    pad = k // 2
    oi = jnp.arange(h).reshape(h, 1, 1, 1)
    oj = jnp.arange(w).reshape(1, w, 1, 1)
    ii = jnp.arange(h).reshape(1, 1, h, 1)
    ij = jnp.arange(w).reshape(1, 1, 1, w)
    di = ii - oi + pad
    dj = ij - oj + pad
    valid = (di >= 0) & (di < k) & (dj >= 0) & (dj < k)
    m = kernel[:, 0, jnp.clip(di, 0, k - 1), jnp.clip(dj, 0, k - 1)]   # (S, h, w, h, w)
    m = jnp.where(valid[None], m, 0.0)
    return m.reshape(S, HW, HW)                                        # [s, out_local, in_local]


def prepare_operands(p):
    # ---- fold BN + all reparam conv branches into one per-shareset local (HW, HW) map + bias ----
    sc3, sh3 = bn_affine(p["g3"], p["be3"], p["m3"], p["v3"])
    m_eff = sc3[:, None, None] * p["w3"]                               # (S, out_local, in_local)
    b_eff = sh3
    for cw, bn in zip(p["conv_ws"], p["bn_branch"]):
        sck, shk = bn_affine(*bn)
        m_eff = m_eff + sck[:, None, None] * conv_to_fc(cw)
        b_eff = b_eff + shk

    # ---- lift the per-partition local map into the flat (H*W, H*W) spatial domain ----
    # weff[s][a_in, a_out] = m_eff[s][local(a_out), local(a_in)] iff same spatial partition.
    a = jnp.arange(HWF)
    big_i, big_j = a // W, a % W
    hp_l, i_l = big_i // h, big_i % h
    wp_l, j_l = big_j // w, big_j % w
    pidx = (hp_l * WP + wp_l) * HW + i_l * w + j_l                     # flat lane -> partition-ordered
    eye_p = jnp.eye(HP * WP, dtype=jnp.float32)
    weff = jnp.stack([
        jnp.kron(eye_p, jnp.transpose(m_eff[s]))[pidx[:, None], pidx[None, :]]
        for s in range(S)
    ])                                                                 # (S, 256, 256)

    # ---- GlobalPerceptron weights replicated per batch (block-diagonal) ----
    eye_n = jnp.eye(N, dtype=jnp.float32)
    w1blk = jnp.kron(eye_n, p["w1"])                                   # (NCI, NC)
    w2blk = jnp.kron(eye_n, p["w2"])                                   # (NC, NCI)
    b1rep = jnp.tile(p["b1"], N).reshape(NCI, 1)
    b2rep = jnp.tile(p["b2"], N).reshape(NC, 1)

    # ---- per-row shareset masks + folded bias column (kernel rows are (n, c_out)) ----
    rows = jnp.arange(NC)
    s_row = (rows % C) % S
    masks = (s_row[:, None] == jnp.arange(S)[None, :]).astype(jnp.float32)   # (NC, S)
    bias_col = b_eff[s_row].reshape(NC, 1)

    # ---- pack every sub-(8,128) operand into one aligned constant slab ----
    slab = jnp.zeros((SLAB_R, 128), jnp.float32)
    slab = slab.at[:NCI, L_W1:L_W1 + NC].set(w1blk)
    slab = slab.at[:NCI, L_B1:L_B1 + 1].set(b1rep)
    slab = slab.at[:NC, L_W2:L_W2 + NCI].set(w2blk)
    slab = slab.at[:NC, L_B2:L_B2 + 1].set(b2rep)
    slab = slab.at[:NC, L_MASK:L_MASK + S].set(masks)
    slab = slab.at[:NC, L_BIAS:L_BIAS + 1].set(bias_col)
    return weff, slab


def init_params(key):
    ks = jax.random.split(key, 9 + len(REPARAM_K))
    p = {}
    # GlobalPerceptron fc1 / fc2 (1x1 convs == dense)
    p["w1"] = 0.2 * jax.random.normal(ks[0], (C_INT, C), jnp.float32)
    p["b1"] = 0.1 * jax.random.normal(ks[1], (C_INT,), jnp.float32)
    p["w2"] = 0.2 * jax.random.normal(ks[2], (C, C_INT), jnp.float32)
    p["b2"] = 0.1 * jax.random.normal(ks[3], (C,), jnp.float32)
    # fc3: Conv2d(S*h*w, S*h*w, 1, groups=S, bias=False)  -> per-shareset (HW_out, HW_in)
    p["w3"] = 0.1 * jax.random.normal(ks[4], (S, HW, HW), jnp.float32)
    # fc3_bn: BatchNorm2d(S)  (eval mode running stats)
    p["g3"] = 1.0 + 0.1 * jax.random.normal(ks[5], (S,), jnp.float32)
    p["be3"] = 0.1 * jax.random.normal(ks[6], (S,), jnp.float32)
    p["m3"] = 0.1 * jax.random.normal(ks[7], (S,), jnp.float32)
    p["v3"] = 1.0 + 0.1 * jnp.abs(jax.random.normal(ks[8], (S,), jnp.float32))
    # repconv{k}: Conv2d(S, S, k, padding=k//2, groups=S, bias=False) + BatchNorm2d(S)
    p["conv_ws"] = []
    p["bn_branch"] = []
    for idx, k in enumerate(REPARAM_K):
        kk = jax.random.split(ks[9 + idx], 5)
        p["conv_ws"].append(0.1 * jax.random.normal(kk[0], (S, 1, k, k), jnp.float32))
        p["bn_branch"].append((
            1.0 + 0.1 * jax.random.normal(kk[1], (S,), jnp.float32),
            0.1 * jax.random.normal(kk[2], (S,), jnp.float32),
            0.1 * jax.random.normal(kk[3], (S,), jnp.float32),
            1.0 + 0.1 * jnp.abs(jax.random.normal(kk[4], (S,), jnp.float32)),
        ))
    return p


# ----------------------------- forward (glue + fused kernel) -----------------------------
def repmlp_forward(x, operands):
    weff, slab = operands
    # The module's un-partition reshape swaps channel-group <-> spatial-partition indices.
    # Fold that fixed shuffle into the INPUT (one XLA relayout), so the kernel output rows are
    # already (n, c_out) and its lanes are the final flat H*W spatial order.
    #   view dims: (n, cP_h, cP_w, c_s | sp_h, i, sp_w, j), channel c = (cP_h*WP + cP_w)*S + c_s
    xperm = (x.reshape(N, HP, WP, S, HP, h, WP, w)
               .transpose(0, 4, 6, 3, 1, 5, 2, 7)
               .reshape(NC, HWF))
    xflat = x.reshape(NC, HWF)                        # pure reshape (no relayout), for pooling
    y = repmlp_fused_call(xperm, xflat, weff, slab)   # (NC, 256), rows = (n, c_out)
    return y.reshape(N, C, H, W)                      # pure reshape (no relayout)


repmlp_forward_jit = jax.jit(repmlp_forward)


# ----------------------------- pure-JAX reference (mirrors the PyTorch ops) -----------------------------
def reference_forward(x, p):
    pooled = jnp.mean(x, axis=(2, 3))
    h1 = jnp.maximum(pooled @ p["w1"].T + p["b1"], 0.0)
    gv = jax.nn.sigmoid(h1 @ p["w2"].T + p["b2"]).reshape(N, C, 1, 1)

    parts = x.reshape(N, C, HP, h, WP, w).transpose(0, 2, 4, 1, 3, 5)
    fc_in = parts.reshape(B2, S, HW)
    fc3 = jnp.einsum("rsi,soi->rso", fc_in, p["w3"])
    sc3, sh3 = bn_affine(p["g3"], p["be3"], p["m3"], p["v3"])
    total = fc3 * sc3[None, :, None] + sh3[None, :, None]

    conv_in = parts.reshape(B2, S, h, w)
    for cw, (gk, bk, mk, vk) in zip(p["conv_ws"], p["bn_branch"]):
        k = cw.shape[-1]
        co = jax.lax.conv_general_dilated(
            conv_in, cw, window_strides=(1, 1),
            padding=[(k // 2, k // 2), (k // 2, k // 2)],
            feature_group_count=S,
            dimension_numbers=("NCHW", "OIHW", "NCHW"))
        sck, shk = bn_affine(gk, bk, mk, vk)
        total = total + (co * sck[None, :, None, None]
                         + shk[None, :, None, None]).reshape(B2, S, HW)

    t = total.reshape(-1, HP, WP, S, h, w).transpose(0, 3, 1, 4, 2, 5).reshape(N, C, H, W)
    return t * gv


# ----------------------------- main -----------------------------
if __name__ == "__main__":
    root = jax.random.PRNGKey(0)
    data_key, param_key = jax.random.split(root)
    params = init_params(param_key)
    x = jax.random.normal(data_key, (N, C, H, W), jnp.float32)

    operands = prepare_operands(params)
    out = jax.block_until_ready(repmlp_forward_jit(x, operands))

    ref = reference_forward(x, params)
    assert out.shape == (N, C, H, W)
    assert bool(jnp.allclose(out, ref, atol=1e-3, rtol=1e-3)), "mismatch vs pure-JAX reference"
    print("KERNEL_OK")
</pallas_src>

<mosaic_0001>
module attributes {stable_mosaic.version = 11 : i64} {
  func.func @_repmlp_fused_kernel(%arg0: memref<16x256xf32, #tpu.memory_space<vmem>>, %arg1: memref<16x256xf32, #tpu.memory_space<vmem>>, %arg2: memref<2x256x256xf32, #tpu.memory_space<vmem>>, %arg3: memref<16x128xf32, #tpu.memory_space<vmem>>, %arg4: memref<16x256xf32, #tpu.memory_space<vmem>>) attributes {dimension_semantics = [], scalar_prefetch = 0 : i64, scratch_operands = 0 : i64, tpu.core_type = #tpu.core_type<tc>} {
    %c0 = arith.constant 0 : index
    %c0_0 = arith.constant 0 : index
    %0 = vector.load %arg0[%c0, %c0_0] : memref<16x256xf32, #tpu.memory_space<vmem>>, vector<16x256xf32>
    %c0_1 = arith.constant 0 : index
    %c0_2 = arith.constant 0 : index
    %c0_3 = arith.constant 0 : index
    %1 = vector.load %arg2[%c0_1, %c0_2, %c0_3] : memref<2x256x256xf32, #tpu.memory_space<vmem>>, vector<1x256x256xf32>
    %2 = vector.shape_cast %1 : vector<1x256x256xf32> to vector<256x256xf32>
    %cst = arith.constant dense<0.000000e+00> : vector<16x256xf32>
    %3 = tpu.matmul %0, %2, %cst {dimension_numbers = #tpu.dot_dimension_numbers<[1], [0], [0], [1], [0, 0, 1, 1], [], []>} : vector<16x256xf32>, vector<256x256xf32>, vector<16x256xf32> -> vector<16x256xf32>
    %c1 = arith.constant 1 : index
    %c0_4 = arith.constant 0 : index
    %c0_5 = arith.constant 0 : index
    %4 = vector.load %arg2[%c1, %c0_4, %c0_5] : memref<2x256x256xf32, #tpu.memory_space<vmem>>, vector<1x256x256xf32>
    %5 = vector.shape_cast %4 : vector<1x256x256xf32> to vector<256x256xf32>
    %cst_6 = arith.constant dense<0.000000e+00> : vector<16x256xf32>
    %6 = tpu.matmul %0, %5, %cst_6 {dimension_numbers = #tpu.dot_dimension_numbers<[1], [0], [0], [1], [0, 0, 1, 1], [], []>} : vector<16x256xf32>, vector<256x256xf32>, vector<16x256xf32> -> vector<16x256xf32>
    %c0_7 = arith.constant 0 : index
    %c0_8 = arith.constant 0 : index
    %7 = vector.load %arg1[%c0_7, %c0_8] : memref<16x256xf32, #tpu.memory_space<vmem>>, vector<16x256xf32>
    %cst_9 = arith.constant dense<0.000000e+00> : vector<16xf32>
    %8 = vector.multi_reduction <add>, %7, %cst_9 [1] : vector<16x256xf32> to vector<16xf32>
    %9 = vector.shape_cast %8 : vector<16xf32> to vector<16x1xf32>
    %cst_10 = arith.constant 3.906250e-03 : f32
    %10 = vector.broadcast %cst_10 : f32 to vector<16x1xf32>
    %11 = arith.mulf %9, %10 : vector<16x1xf32>
    %c0_11 = arith.constant 0 : index
    %c0_12 = arith.constant 0 : index
    %12 = vector.load %arg3[%c0_11, %c0_12] : memref<16x128xf32, #tpu.memory_space<vmem>>, vector<4x16xf32>
    %c0_13 = arith.constant 0 : index
    %c16 = arith.constant 16 : index
    %13 = vector.load %arg3[%c0_13, %c16] : memref<16x128xf32, #tpu.memory_space<vmem>>, vector<4x1xf32>
    %c0_14 = arith.constant 0 : index
    %c32 = arith.constant 32 : index
    %14 = vector.load %arg3[%c0_14, %c32] : memref<16x128xf32, #tpu.memory_space<vmem>>, vector<16x4xf32>
    %c0_15 = arith.constant 0 : index
    %c36 = arith.constant 36 : index
    %15 = vector.load %arg3[%c0_15, %c36] : memref<16x128xf32, #tpu.memory_space<vmem>>, vector<16x1xf32>
    %cst_16 = arith.constant dense<0.000000e+00> : vector<4x1xf32>
    %16 = tpu.matmul %12, %11, %cst_16 {dimension_numbers = #tpu.dot_dimension_numbers<[1], [0], [0], [1], [0, 0, 1, 1], [], []>} : vector<4x16xf32>, vector<16x1xf32>, vector<4x1xf32> -> vector<4x1xf32>
    %17 = arith.addf %16, %13 : vector<4x1xf32>
    %cst_17 = arith.constant 0.000000e+00 : f32
    %18 = vector.broadcast %cst_17 : f32 to vector<4x1xf32>
    %19 = arith.maximumf %17, %18 : vector<4x1xf32>
    %cst_18 = arith.constant dense<0.000000e+00> : vector<16x1xf32>
    %20 = tpu.matmul %14, %19, %cst_18 {dimension_numbers = #tpu.dot_dimension_numbers<[1], [0], [0], [1], [0, 0, 1, 1], [], []>} : vector<16x4xf32>, vector<4x1xf32>, vector<16x1xf32> -> vector<16x1xf32>
    %21 = arith.addf %20, %15 : vector<16x1xf32>
    %22 = arith.negf %21 : vector<16x1xf32>
    %23 = math.exp %22 : vector<16x1xf32>
    %cst_19 = arith.constant 1.000000e+00 : f32
    %24 = vector.broadcast %cst_19 : f32 to vector<16x1xf32>
    %25 = arith.addf %24, %23 : vector<16x1xf32>
    %26 = arith.divf %24, %25 : vector<16x1xf32>
    %c0_20 = arith.constant 0 : index
    %c64 = arith.constant 64 : index
    %27 = vector.load %arg3[%c0_20, %c64] : memref<16x128xf32, #tpu.memory_space<vmem>>, vector<16x1xf32>
    %28 = vector.broadcast %27 : vector<16x1xf32> to vector<16x256xf32>
    %29 = arith.mulf %3, %28 : vector<16x256xf32>
    %c0_21 = arith.constant 0 : index
    %c65 = arith.constant 65 : index
    %30 = vector.load %arg3[%c0_21, %c65] : memref<16x128xf32, #tpu.memory_space<vmem>>, vector<16x1xf32>
    %31 = vector.broadcast %30 : vector<16x1xf32> to vector<16x256xf32>
    %32 = arith.mulf %6, %31 : vector<16x256xf32>
    %33 = arith.addf %29, %32 : vector<16x256xf32>
    %c0_22 = arith.constant 0 : index
    %c66 = arith.constant 66 : index
    %34 = vector.load %arg3[%c0_22, %c66] : memref<16x128xf32, #tpu.memory_space<vmem>>, vector<16x1xf32>
    %35 = vector.broadcast %34 : vector<16x1xf32> to vector<16x256xf32>
    %36 = arith.addf %33, %35 : vector<16x256xf32>
    %37 = vector.broadcast %26 : vector<16x1xf32> to vector<16x256xf32>
    %38 = arith.mulf %36, %37 : vector<16x256xf32>
    %c0_23 = arith.constant 0 : index
    %c0_24 = arith.constant 0 : index
    %39 = vector.load %arg4[%c0_23, %c0_24] : memref<16x256xf32, #tpu.memory_space<vmem>>, vector<16x256xf32>
    tpu.vector_store %arg4[%c0_23, %c0_24], %38 {strides = array<i32>} : memref<16x256xf32, #tpu.memory_space<vmem>>, vector<16x256xf32>,
    return
  }
}

</mosaic_0001>

<llo_original>
// kernel: repmlp_forward.1
$region0: #{repmlp_forward.1}
  #allocation0 [shape = 'u32[]', space=smem, size = 0x4, offset = 0x4, fixed_abs, tag = 'smem constant byte address 0x4 - core index']
  #allocation1 [shape = 'u32[144,128]{1,0:T(1,128)}', space=vmem, size = 0x12000, scoped, tag = 'internal scratch']
  %s0 = inlined_call_operand.vmem [shape: f32[16,256], index: 0, kind: input, shape index: {}]
  %s1 = inlined_call_operand.vmem [shape: f32[16,256], index: 1, kind: input, shape index: {}]
  %s2 = inlined_call_operand.vmem [shape: f32[2,256,256], index: 2, kind: input, shape index: {}]
  %s3 = inlined_call_operand.vmem [shape: f32[16,128], index: 3, kind: input, shape index: {}]
  %s4 = inlined_call_operand.vmem [shape: f32[16,256], index: 4, kind: output, shape index: {}]
  %s5 = sld [smem:[#allocation0]]
  $region26: #{repmlp_forward.1} parent=0
    _
  %s7 = ssub.s32 1, %s5
  %s8 = scalar_select 0, %s7, %s5
  // Predicated region
  $region2: #{repmlp_forward.1} parent=0 // pred_check
    _
  $region3: #{repmlp_forward.1} parent=0 // pred_check_branch
    %10 = sbr.rel (0) target = $region5
  $region4: #{repmlp_forward.1} parent=0 // pred_region
    _
  $region5: #{repmlp_forward.1} parent=0 // pred_fallthru
    _
  // Predicated region
  $region6: #{repmlp_forward.1} parent=0 // pred_check
    _
  $region7: #{repmlp_forward.1} parent=0 // pred_check_branch
    %12 = sbr.rel (0) target = $region9
  $region8: #{repmlp_forward.1} parent=0 // pred_region
    _
  $region9: #{repmlp_forward.1} parent=0 // pred_fallthru
    _
  // Predicated region
  $region10: #{repmlp_forward.1} parent=0 // pred_check
    _
  $region11: #{repmlp_forward.1} parent=0 // pred_check_branch
    %14 = sbr.rel (0) target = $region13
  $region12: #{repmlp_forward.1} parent=0 // pred_region
    _
  $region13: #{repmlp_forward.1} parent=0 // pred_fallthru
    _
  // Predicated region
  $region14: #{repmlp_forward.1} parent=0 // pred_check
    _
  $region15: #{repmlp_forward.1} parent=0 // pred_check_branch
    %16 = sbr.rel (0) target = $region17
  $region16: #{repmlp_forward.1} parent=0 // pred_region
    _
  $region17: #{repmlp_forward.1} parent=0 // pred_fallthru
    _
  %v17 = vld [vmem:[%s0] sm:$0xff]
  %v18 = vld [vmem:[%s0 + $0x8] sm:$0xff]
  %v19 = vld [vmem:[%s0 + $0x10] sm:$0xff]
  %v20 = vld [vmem:[%s0 + $0x18] sm:$0xff]
  %v21 = vld [vmem:[%s2] sm:$0xff]
  %v22 = vld [vmem:[%s2 + $0x8] sm:$0xff]
  %v23 = vld [vmem:[%s2 + $0x10] sm:$0xff]
  %v24 = vld [vmem:[%s2 + $0x18] sm:$0xff]
  %v25 = vld [vmem:[%s2 + $0x20] sm:$0xff]
  %v26 = vld [vmem:[%s2 + $0x28] sm:$0xff]
  %v27 = vld [vmem:[%s2 + $0x30] sm:$0xff]
  %v28 = vld [vmem:[%s2 + $0x38] sm:$0xff]
  %v29 = vld [vmem:[%s2 + $0x40] sm:$0xff]
  %v30 = vld [vmem:[%s2 + $0x48] sm:$0xff]
  %v31 = vld [vmem:[%s2 + $0x50] sm:$0xff]
  %v32 = vld [vmem:[%s2 + $0x58] sm:$0xff]
  %v33 = vld [vmem:[%s2 + $0x60] sm:$0xff]
  %v34 = vld [vmem:[%s2 + $0x68] sm:$0xff]
  %v35 = vld [vmem:[%s2 + $0x70] sm:$0xff]
  %v36 = vld [vmem:[%s2 + $0x78] sm:$0xff]
  %v37 = vld [vmem:[%s2 + $0x80] sm:$0xff]
  %v38 = vld [vmem:[%s2 + $0x88] sm:$0xff]
  %v39 = vld [vmem:[%s2 + $0x90] sm:$0xff]
  %v40 = vld [vmem:[%s2 + $0x98] sm:$0xff]
  %v41 = vld [vmem:[%s2 + $0xa0] sm:$0xff]
  %v42 = vld [vmem:[%s2 + $0xa8] sm:$0xff]
  %v43 = vld [vmem:[%s2 + $0xb0] sm:$0xff]
  %v44 = vld [vmem:[%s2 + $0xb8] sm:$0xff]
  %v45 = vld [vmem:[%s2 + $0xc0] sm:$0xff]
  %v46 = vld [vmem:[%s2 + $0xc8] sm:$0xff]
  %v47 = vld [vmem:[%s2 + $0xd0] sm:$0xff]
  %v48 = vld [vmem:[%s2 + $0xd8] sm:$0xff]
  %v49 = vld [vmem:[%s2 + $0xe0] sm:$0xff]
  %v50 = vld [vmem:[%s2 + $0xe8] sm:$0xff]
  %v51 = vld [vmem:[%s2 + $0xf0] sm:$0xff]
  %v52 = vld [vmem:[%s2 + $0xf8] sm:$0xff]
  %v53 = vld [vmem:[%s2 + $0x100] sm:$0xff]
  %v54 = vld [vmem:[%s2 + $0x108] sm:$0xff]
  %v55 = vld [vmem:[%s2 + $0x110] sm:$0xff]
  %v56 = vld [vmem:[%s2 + $0x118] sm:$0xff]
  %v57 = vld [vmem:[%s2 + $0x120] sm:$0xff]
  %v58 = vld [vmem:[%s2 + $0x128] sm:$0xff]
  %v59 = vld [vmem:[%s2 + $0x130] sm:$0xff]
  %v60 = vld [vmem:[%s2 + $0x138] sm:$0xff]
  %v61 = vld [vmem:[%s2 + $0x140] sm:$0xff]
  %v62 = vld [vmem:[%s2 + $0x148] sm:$0xff]
  %v63 = vld [vmem:[%s2 + $0x150] sm:$0xff]
  %v64 = vld [vmem:[%s2 + $0x158] sm:$0xff]
  %v65 = vld [vmem:[%s2 + $0x160] sm:$0xff]
  %v66 = vld [vmem:[%s2 + $0x168] sm:$0xff]
  %v67 = vld [vmem:[%s2 + $0x170] sm:$0xff]
  %v68 = vld [vmem:[%s2 + $0x178] sm:$0xff]
  %v69 = vld [vmem:[%s2 + $0x180] sm:$0xff]
  %v70 = vld [vmem:[%s2 + $0x188] sm:$0xff]
  %v71 = vld [vmem:[%s2 + $0x190] sm:$0xff]
  %v72 = vld [vmem:[%s2 + $0x198] sm:$0xff]
  %v73 = vld [vmem:[%s2 + $0x1a0] sm:$0xff]
  %v74 = vld [vmem:[%s2 + $0x1a8] sm:$0xff]
  %v75 = vld [vmem:[%s2 + $0x1b0] sm:$0xff]
  %v76 = vld [vmem:[%s2 + $0x1b8] sm:$0xff]
  %v77 = vld [vmem:[%s2 + $0x1c0] sm:$0xff]
  %v78 = vld [vmem:[%s2 + $0x1c8] sm:$0xff]
  %v79 = vld [vmem:[%s2 + $0x1d0] sm:$0xff]
  %v80 = vld [vmem:[%s2 + $0x1d8] sm:$0xff]
  %v81 = vld [vmem:[%s2 + $0x1e0] sm:$0xff]
  %v82 = vld [vmem:[%s2 + $0x1e8] sm:$0xff]
  %v83 = vld [vmem:[%s2 + $0x1f0] sm:$0xff]
  %v84 = vld [vmem:[%s2 + $0x1f8] sm:$0xff]
  %85 = vmatprep.subr.mxu0 %v22
  %86 = vmatpush1.msra.mxu0 %v21
  %87 = vmatprep.subr.mxu0 %v24
  %88 = vmatpush1.msra.mxu0 %v23
  %89 = vmatprep.subr.mxu0 %v26
  %90 = vmatpush1.msra.mxu0 %v25
  %91 = vmatprep.subr.mxu0 %v28
  %92 = vmatpush1.msra.mxu0 %v27
  %93 = vmatprep.subr.mxu0 %v30
  %94 = vmatpush1.msra.mxu0 %v29
  %95 = vmatprep.subr.mxu0 %v32
  %96 = vmatpush1.msra.mxu0 %v31
  %97 = vmatprep.subr.mxu0 %v34
  %98 = vmatpush1.msra.mxu0 %v33
  %99 = vmatprep.subr.mxu0 %v36
  %100 = vmatpush1.msra.mxu0 %v35
  %101 = vmatprep.subr.mxu0 %v38
  %102 = vmatpush1.msra.mxu0 %v37
  %103 = vmatprep.subr.mxu0 %v40
  %104 = vmatpush1.msra.mxu0 %v39
  %105 = vmatprep.subr.mxu0 %v42
  %106 = vmatpush1.msra.mxu0 %v41
  %107 = vmatprep.subr.mxu0 %v44
  %108 = vmatpush1.msra.mxu0 %v43
  %109 = vmatprep.subr.mxu0 %v46
  %110 = vmatpush1.msra.mxu0 %v45
  %111 = vmatprep.subr.mxu0 %v48
  %112 = vmatpush1.msra.mxu0 %v47
  %113 = vmatprep.subr.mxu0 %v50
  %114 = vmatpush1.msra.mxu0 %v49
  %115 = vmatprep.subr.mxu0 %v52
  %116 = vmatpush1.msra.mxu0 %v51
  %117 = vmatprep.subr.mxu0 %v54
  %118 = vmatpush1.msra.mxu0 %v53
  %119 = vmatprep.subr.mxu0 %v56
  %120 = vmatpush1.msra.mxu0 %v55
  %121 = vmatprep.subr.mxu0 %v58
  %122 = vmatpush1.msra.mxu0 %v57
  %123 = vmatprep.subr.mxu0 %v60
  %124 = vmatpush1.msra.mxu0 %v59
  %125 = vmatprep.subr.mxu0 %v62
  %126 = vmatpush1.msra.mxu0 %v61
  %127 = vmatprep.subr.mxu0 %v64
  %128 = vmatpush1.msra.mxu0 %v63
  %129 = vmatprep.subr.mxu0 %v66
  %130 = vmatpush1.msra.mxu0 %v65
  %131 = vmatprep.subr.mxu0 %v68
  %132 = vmatpush1.msra.mxu0 %v67
  %133 = vmatprep.subr.mxu0 %v70
  %134 = vmatpush1.msra.mxu0 %v69
  %135 = vmatprep.subr.mxu0 %v72
  %136 = vmatpush1.msra.mxu0 %v71
  %137 = vmatprep.subr.mxu0 %v74
  %138 = vmatpush1.msra.mxu0 %v73
  %139 = vmatprep.subr.mxu0 %v76
  %140 = vmatpush1.msra.mxu0 %v75
  %141 = vmatprep.subr.mxu0 %v78
  %142 = vmatpush1.msra.mxu0 %v77
  %143 = vmatprep.subr.mxu0 %v80
  %144 = vmatpush1.msra.mxu0 %v79
  %145 = vmatprep.subr.mxu0 %v82
  %146 = vmatpush1.msra.mxu0 %v81
  %147 = vmatprep.subr.mxu0 %v84
  %148 = vmatpush1.msra.mxu0 %v83
  %149 = vmatprep.mubr.f32.mxu0 %v18
  %150 = vmatmul.mubr.f32.gmra.mrb[0].mxu0 %v17
  %v151 = vpop.f32.mrb[0].mxu0
  %v152 = vadd.f32 0.0, %v151
  %v153 = vpop.f32.mrb[0].mxu0
  %v154 = vadd.f32 0.0, %v153
  %155 = vmatprep.mubr.f32.mxu0 %v20
  %156 = vmatmul.mubr.f32.gmra.mrb[0].mxu0 %v19
  %v157 = vpop.f32.mrb[0].mxu0
  %v158 = vadd.f32 0.0, %v157
  %v159 = vpop.f32.mrb[0].mxu0
  %v160 = vadd.f32 0.0, %v159
  %161 = vdwg.mxu0
  %s162 = scalar_lea.vmem %s2, 512
  %v163 = vld [vmem:[%s162] sm:$0xff]
  %v164 = vld [vmem:[%s162 + $0x8] sm:$0xff]
  %v165 = vld [vmem:[%s162 + $0x10] sm:$0xff]
  %v166 = vld [vmem:[%s162 + $0x18] sm:$0xff]
  %v167 = vld [vmem:[%s162 + $0x20] sm:$0xff]
  %v168 = vld [vmem:[%s162 + $0x28] sm:$0xff]
  %v169 = vld [vmem:[%s162 + $0x30] sm:$0xff]
  %v170 = vld [vmem:[%s162 + $0x38] sm:$0xff]
  %v171 = vld [vmem:[%s162 + $0x40] sm:$0xff]
  %v172 = vld [vmem:[%s162 + $0x48] sm:$0xff]
  %v173 = vld [vmem:[%s162 + $0x50] sm:$0xff]
  %v174 = vld [vmem:[%s162 + $0x58] sm:$0xff]
  %v175 = vld [vmem:[%s162 + $0x60] sm:$0xff]
  %v176 = vld [vmem:[%s162 + $0x68] sm:$0xff]
  %v177 = vld [vmem:[%s162 + $0x70] sm:$0xff]
  %v178 = vld [vmem:[%s162 + $0x78] sm:$0xff]
  %v179 = vld [vmem:[%s162 + $0x80] sm:$0xff]
  %v180 = vld [vmem:[%s162 + $0x88] sm:$0xff]
  %v181 = vld [vmem:[%s162 + $0x90] sm:$0xff]
  %v182 = vld [vmem:[%s162 + $0x98] sm:$0xff]
  %v183 = vld [vmem:[%s162 + $0xa0] sm:$0xff]
  %v184 = vld [vmem:[%s162 + $0xa8] sm:$0xff]
  %v185 = vld [vmem:[%s162 + $0xb0] sm:$0xff]
  %v186 = vld [vmem:[%s162 + $0xb8] sm:$0xff]
  %v187 = vld [vmem:[%s162 + $0xc0] sm:$0xff]
  %v188 = vld [vmem:[%s162 + $0xc8] sm:$0xff]
  %v189 = vld [vmem:[%s162 + $0xd0] sm:$0xff]
  %v190 = vld [vmem:[%s162 + $0xd8] sm:$0xff]
  %v191 = vld [vmem:[%s162 + $0xe0] sm:$0xff]
  %v192 = vld [vmem:[%s162 + $0xe8] sm:$0xff]
  %v193 = vld [vmem:[%s162 + $0xf0] sm:$0xff]
  %v194 = vld [vmem:[%s162 + $0xf8] sm:$0xff]
  %v195 = vld [vmem:[%s162 + $0x100] sm:$0xff]
  %v196 = vld [vmem:[%s162 + $0x108] sm:$0xff]
  %v197 = vld [vmem:[%s162 + $0x110] sm:$0xff]
  %v198 = vld [vmem:[%s162 + $0x118] sm:$0xff]
  %v199 = vld [vmem:[%s162 + $0x120] sm:$0xff]
  %v200 = vld [vmem:[%s162 + $0x128] sm:$0xff]
  %v201 = vld [vmem:[%s162 + $0x130] sm:$0xff]
  %v202 = vld [vmem:[%s162 + $0x138] sm:$0xff]
  %v203 = vld [vmem:[%s162 + $0x140] sm:$0xff]
  %v204 = vld [vmem:[%s162 + $0x148] sm:$0xff]
  %v205 = vld [vmem:[%s162 + $0x150] sm:$0xff]
  %v206 = vld [vmem:[%s162 + $0x158] sm:$0xff]
  %v207 = vld [vmem:[%s162 + $0x160] sm:$0xff]
  %v208 = vld [vmem:[%s162 + $0x168] sm:$0xff]
  %v209 = vld [vmem:[%s162 + $0x170] sm:$0xff]
  %v210 = vld [vmem:[%s162 + $0x178] sm:$0xff]
  %v211 = vld [vmem:[%s162 + $0x180] sm:$0xff]
  %v212 = vld [vmem:[%s162 + $0x188] sm:$0xff]
  %v213 = vld [vmem:[%s162 + $0x190] sm:$0xff]
  %v214 = vld [vmem:[%s162 + $0x198] sm:$0xff]
  %v215 = vld [vmem:[%s162 + $0x1a0] sm:$0xff]
  %v216 = vld [vmem:[%s162 + $0x1a8] sm:$0xff]
  %v217 = vld [vmem:[%s162 + $0x1b0] sm:$0xff]
  %v218 = vld [vmem:[%s162 + $0x1b8] sm:$0xff]
  %v219 = vld [vmem:[%s162 + $0x1c0] sm:$0xff]
  %v220 = vld [vmem:[%s162 + $0x1c8] sm:$0xff]
  %v221 = vld [vmem:[%s162 + $0x1d0] sm:$0xff]
  %v222 = vld [vmem:[%s162 + $0x1d8] sm:$0xff]
  %v223 = vld [vmem:[%s162 + $0x1e0] sm:$0xff]
  %v224 = vld [vmem:[%s162 + $0x1e8] sm:$0xff]
  %v225 = vld [vmem:[%s162 + $0x1f0] sm:$0xff]
  %v226 = vld [vmem:[%s162 + $0x1f8] sm:$0xff]
  %227 = vmatprep.subr.mxu0 %v164
  %228 = vmatpush1.msra.mxu0 %v163
  %229 = vmatprep.subr.mxu0 %v166
  %230 = vmatpush1.msra.mxu0 %v165
  %231 = vmatprep.subr.mxu0 %v168
  %232 = vmatpush1.msra.mxu0 %v167
  %233 = vmatprep.subr.mxu0 %v170
  %234 = vmatpush1.msra.mxu0 %v169
  %235 = vmatprep.subr.mxu0 %v172
  %236 = vmatpush1.msra.mxu0 %v171
  %237 = vmatprep.subr.mxu0 %v174
  %238 = vmatpush1.msra.mxu0 %v173
  %239 = vmatprep.subr.mxu0 %v176
  %240 = vmatpush1.msra.mxu0 %v175
  %241 = vmatprep.subr.mxu0 %v178
  %242 = vmatpush1.msra.mxu0 %v177
  %243 = vmatprep.subr.mxu0 %v180
  %244 = vmatpush1.msra.mxu0 %v179
  %245 = vmatprep.subr.mxu0 %v182
  %246 = vmatpush1.msra.mxu0 %v181
  %247 = vmatprep.subr.mxu0 %v184
  %248 = vmatpush1.msra.mxu0 %v183
  %249 = vmatprep.subr.mxu0 %v186
  %250 = vmatpush1.msra.mxu0 %v185
  %251 = vmatprep.subr.mxu0 %v188
  %252 = vmatpush1.msra.mxu0 %v187
  %253 = vmatprep.subr.mxu0 %v190
  %254 = vmatpush1.msra.mxu0 %v189
  %255 = vmatprep.subr.mxu0 %v192
  %256 = vmatpush1.msra.mxu0 %v191
  %257 = vmatprep.subr.mxu0 %v194
  %258 = vmatpush1.msra.mxu0 %v193
  %259 = vmatprep.subr.mxu0 %v196
  %260 = vmatpush1.msra.mxu0 %v195
  %261 = vmatprep.subr.mxu0 %v198
  %262 = vmatpush1.msra.mxu0 %v197
  %263 = vmatprep.subr.mxu0 %v200
  %264 = vmatpush1.msra.mxu0 %v199
  %265 = vmatprep.subr.mxu0 %v202
  %266 = vmatpush1.msra.mxu0 %v201
  %267 = vmatprep.subr.mxu0 %v204
  %268 = vmatpush1.msra.mxu0 %v203
  %269 = vmatprep.subr.mxu0 %v206
  %270 = vmatpush1.msra.mxu0 %v205
  %271 = vmatprep.subr.mxu0 %v208
  %272 = vmatpush1.msra.mxu0 %v207
  %273 = vmatprep.subr.mxu0 %v210
  %274 = vmatpush1.msra.mxu0 %v209
  %275 = vmatprep.subr.mxu0 %v212
  %276 = vmatpush1.msra.mxu0 %v211
  %277 = vmatprep.subr.mxu0 %v214
  %278 = vmatpush1.msra.mxu0 %v213
  %279 = vmatprep.subr.mxu0 %v216
  %280 = vmatpush1.msra.mxu0 %v215
  %281 = vmatprep.subr.mxu0 %v218
  %282 = vmatpush1.msra.mxu0 %v217
  %283 = vmatprep.subr.mxu0 %v220
  %284 = vmatpush1.msra.mxu0 %v219
  %285 = vmatprep.subr.mxu0 %v222
  %286 = vmatpush1.msra.mxu0 %v221
  %287 = vmatprep.subr.mxu0 %v224
  %288 = vmatpush1.msra.mxu0 %v223
  %289 = vmatprep.subr.mxu0 %v226
  %290 = vmatpush1.msra.mxu0 %v225
  %291 = vmatprep.mubr.f32.mxu0 %v18
  %292 = vmatmul.mubr.f32.gmra.mrb[0].mxu0 %v17
  %v293 = vpop.f32.mrb[0].mxu0
  %v294 = vadd.f32 0.0, %v293
  %v295 = vpop.f32.mrb[0].mxu0
  %v296 = vadd.f32 0.0, %v295
  %297 = vmatprep.mubr.f32.mxu0 %v20
  %298 = vmatmul.mubr.f32.gmra.mrb[0].mxu0 %v19
  %v299 = vpop.f32.mrb[0].mxu0
  %v300 = vadd.f32 0.0, %v299
  %v301 = vpop.f32.mrb[0].mxu0
  %v302 = vadd.f32 0.0, %v301
  %303 = vdwg.mxu0
  %v304 = vld [vmem:[%s1] sm:$0xff]
  %v305 = vld [vmem:[%s1 + $0x8] sm:$0xff]
  %v306 = vld [vmem:[%s1 + $0x10] sm:$0xff]
  %v307 = vld [vmem:[%s1 + $0x18] sm:$0xff]
  %v308 = vadd.f32 %v304, %v305
  %309 = vadd.xlane.f32.xlu0 %v308
  %v310 = vpop.xlane.xlu0 %309
  %v311 = vadd.f32 %v306, %v307
  %312 = vadd.xlane.f32.xlu0 %v311
  %v313 = vpop.xlane.xlu0 %312
  %v314 = vmul.f32 %v310, 0.00390625
  %v315 = vmul.f32 %v313, 0.00390625
  %v316 = vld [vmem:[%s3] sm:$0xf]
  %v317 = vld [vmem:[%s3] sm:$0xff]
  %v318 = vld [vmem:[%s3 + $0x8] sm:$0xff]
  %320 = vrot.lane.b32.xlu0 %v316, 112
  %v321 = vpop.permute.xlu0 %320
  %vm323 = vcmask 130048
  %v324 = vsel %vm323, %v316, 0
  %326 = vmatprep.subr.mxu0 0.0
  %327 = vmatpush1.msra.mxu0 %v314
  %328 = vmatprep.subr.mxu0 0.0
  %329 = vmatpush1.msra.mxu0 %v315
  %330 = vmatprep.subr.mxu0 0.0
  %331 = vmatpush1.msra.mxu0 0.0
  %332 = vmatprep.subr.mxu0 0.0
  %333 = vmatpush1.msra.mxu0 0.0
  %334 = vmatprep.subr.mxu0 0.0
  %335 = vmatpush1.msra.mxu0 0.0
  %336 = vmatprep.subr.mxu0 0.0
  %337 = vmatpush1.msra.mxu0 0.0
  %338 = vmatprep.subr.mxu0 0.0
  %339 = vmatpush1.msra.mxu0 0.0
  %340 = vmatprep.subr.mxu0 0.0
  %341 = vmatpush1.msra.mxu0 0.0
  %342 = vmatprep.subr.mxu0 0.0
  %343 = vmatpush1.msra.mxu0 0.0
  %344 = vmatprep.subr.mxu0 0.0
  %345 = vmatpush1.msra.mxu0 0.0
  %346 = vmatprep.subr.mxu0 0.0
  %347 = vmatpush1.msra.mxu0 0.0
  %348 = vmatprep.subr.mxu0 0.0
  %349 = vmatpush1.msra.mxu0 0.0
  %350 = vmatprep.subr.mxu0 0.0
  %351 = vmatpush1.msra.mxu0 0.0
  %352 = vmatprep.subr.mxu0 0.0
  %353 = vmatpush1.msra.mxu0 0.0
  %354 = vmatprep.subr.mxu0 0.0
  %355 = vmatpush1.msra.mxu0 0.0
  %356 = vmatprep.subr.mxu0 0.0
  %357 = vmatpush1.msra.mxu0 0.0
  %358 = vmatprep.subr.mxu0 0.0
  %359 = vmatpush1.msra.mxu0 0.0
  %360 = vmatprep.subr.mxu0 0.0
  %361 = vmatpush1.msra.mxu0 0.0
  %362 = vmatprep.subr.mxu0 0.0
  %363 = vmatpush1.msra.mxu0 0.0
  %364 = vmatprep.subr.mxu0 0.0
  %365 = vmatpush1.msra.mxu0 0.0
  %366 = vmatprep.subr.mxu0 0.0
  %367 = vmatpush1.msra.mxu0 0.0
  %368 = vmatprep.subr.mxu0 0.0
  %369 = vmatpush1.msra.mxu0 0.0
  %370 = vmatprep.subr.mxu0 0.0
  %371 = vmatpush1.msra.mxu0 0.0
  %372 = vmatprep.subr.mxu0 0.0
  %373 = vmatpush1.msra.mxu0 0.0
  %374 = vmatprep.subr.mxu0 0.0
  %375 = vmatpush1.msra.mxu0 0.0
  %376 = vmatprep.subr.mxu0 0.0
  %377 = vmatpush1.msra.mxu0 0.0
  %378 = vmatprep.subr.mxu0 0.0
  %379 = vmatpush1.msra.mxu0 0.0
  %380 = vmatprep.subr.mxu0 0.0
  %381 = vmatpush1.msra.mxu0 0.0
  %382 = vmatprep.subr.mxu0 0.0
  %383 = vmatpush1.msra.mxu0 0.0
  %384 = vmatprep.subr.mxu0 0.0
  %385 = vmatpush1.msra.mxu0 0.0
  %386 = vmatprep.subr.mxu0 0.0
  %387 = vmatpush1.msra.mxu0 0.0
  %388 = vmatprep.subr.mxu0 0.0
  %389 = vmatpush1.msra.mxu0 0.0
  %390 = vmatprep.mubr.f32.mxu0 0.0
  %391 = vmatmul.mubr.f32.gmra.mrb[0].mxu0 %v324
  %v392 = vpop.f32.mrb[0].mxu0
  %v393 = vadd.f32 %v321, %v392
  %v394 = vpop.f32.mrb[0].mxu0
  %395 = vdwg.mxu0
  %v396 = vmax.f32 %v393, 0.0
  %399 = vrot.lane.b32.xlu0 %v317, 96
  %v400 = vpop.permute.xlu0 %399
  %401 = vrot.lane.b32.xlu0 %v318, 96
  %v402 = vpop.permute.xlu0 %401
  %403 = vrot.lane.b32.xlu0 %v317, 92
  %v404 = vpop.permute.xlu0 %403
  %405 = vrot.lane.b32.xlu0 %v318, 92
  %v406 = vpop.permute.xlu0 %405
  %vm409 = vcmask 31744
  %v410 = vsel %vm409, %v400, 0
  %v412 = vsel %vm409, %v402, 0
  %vm414 = vcmask 1043456
  %v416 = vsel %vm414, %v396, 0
  %418 = vmatprep.subr.mxu0 0.0
  %419 = vmatpush1.msra.mxu0 %v416
  %420 = vmatprep.subr.mxu0 0.0
  %421 = vmatpush1.msra.mxu0 0.0
  %422 = vmatprep.subr.mxu0 0.0
  %423 = vmatpush1.msra.mxu0 0.0
  %424 = vmatprep.subr.mxu0 0.0
  %425 = vmatpush1.msra.mxu0 0.0
  %426 = vmatprep.subr.mxu0 0.0
  %427 = vmatpush1.msra.mxu0 0.0
  %428 = vmatprep.subr.mxu0 0.0
  %429 = vmatpush1.msra.mxu0 0.0
  %430 = vmatprep.subr.mxu0 0.0
  %431 = vmatpush1.msra.mxu0 0.0
  %432 = vmatprep.subr.mxu0 0.0
  %433 = vmatpush1.msra.mxu0 0.0
  %434 = vmatprep.subr.mxu0 0.0
  %435 = vmatpush1.msra.mxu0 0.0
  %436 = vmatprep.subr.mxu0 0.0
  %437 = vmatpush1.msra.mxu0 0.0
  %438 = vmatprep.subr.mxu0 0.0
  %439 = vmatpush1.msra.mxu0 0.0
  %440 = vmatprep.subr.mxu0 0.0
  %441 = vmatpush1.msra.mxu0 0.0
  %442 = vmatprep.subr.mxu0 0.0
  %443 = vmatpush1.msra.mxu0 0.0
  %444 = vmatprep.subr.mxu0 0.0
  %445 = vmatpush1.msra.mxu0 0.0
  %446 = vmatprep.subr.mxu0 0.0
  %447 = vmatpush1.msra.mxu0 0.0
  %448 = vmatprep.subr.mxu0 0.0
  %449 = vmatpush1.msra.mxu0 0.0
  %450 = vmatprep.subr.mxu0 0.0
  %451 = vmatpush1.msra.mxu0 0.0
  %452 = vmatprep.subr.mxu0 0.0
  %453 = vmatpush1.msra.mxu0 0.0
  %454 = vmatprep.subr.mxu0 0.0
  %455 = vmatpush1.msra.mxu0 0.0
  %456 = vmatprep.subr.mxu0 0.0
  %457 = vmatpush1.msra.mxu0 0.0
  %458 = vmatprep.subr.mxu0 0.0
  %459 = vmatpush1.msra.mxu0 0.0
  %460 = vmatprep.subr.mxu0 0.0
  %461 = vmatpush1.msra.mxu0 0.0
  %462 = vmatprep.subr.mxu0 0.0
  %463 = vmatpush1.msra.mxu0 0.0
  %464 = vmatprep.subr.mxu0 0.0
  %465 = vmatpush1.msra.mxu0 0.0
  %466 = vmatprep.subr.mxu0 0.0
  %467 = vmatpush1.msra.mxu0 0.0
  %468 = vmatprep.subr.mxu0 0.0
  %469 = vmatpush1.msra.mxu0 0.0
  %470 = vmatprep.subr.mxu0 0.0
  %471 = vmatpush1.msra.mxu0 0.0
  %472 = vmatprep.subr.mxu0 0.0
  %473 = vmatpush1.msra.mxu0 0.0
  %474 = vmatprep.subr.mxu0 0.0
  %475 = vmatpush1.msra.mxu0 0.0
  %476 = vmatprep.subr.mxu0 0.0
  %477 = vmatpush1.msra.mxu0 0.0
  %478 = vmatprep.subr.mxu0 0.0
  %479 = vmatpush1.msra.mxu0 0.0
  %480 = vmatprep.subr.mxu0 0.0
  %481 = vmatpush1.msra.mxu0 0.0
  %482 = vmatprep.mubr.f32.mxu0 0.0
  %483 = vmatmul.mubr.f32.gmra.mrb[0].mxu0 %v410
  %v484 = vpop.f32.mrb[0].mxu0
  %v485 = vadd.f32 %v404, %v484
  %v486 = vpop.f32.mrb[0].mxu0
  %487 = vmatprep.mubr.f32.mxu0 0.0
  %488 = vmatmul.mubr.f32.gmra.mrb[0].mxu0 %v412
  %v489 = vpop.f32.mrb[0].mxu0
  %v490 = vadd.f32 %v406, %v489
  %v491 = vpop.f32.mrb[0].mxu0
  %492 = vdwg.mxu0
  %v493 = vxor.u32 %v485, 2147483648
  %v494 = vxor.u32 %v490, 2147483648
  %v495 = vmul.f32 %v493, 1.442695
  %v496 = vpow.pop %v495
  %v497 = vmul.f32 %v494, 1.442695
  %v498 = vpow.pop %v497
  %v499 = vadd.f32 %v496, 1.0
  %v500 = vadd.f32 %v498, 1.0
  %v501 = vrcp.pop %v499
  %v502 = vmul.f32 1.0, %v501
  %v503 = vrcp.pop %v500
  %v504 = vmul.f32 1.0, %v503
  %505 = vset.pattern.permute.xlu0 64
  %506 = vperm.xlu0 %505, %v317
  %v507 = vpop.permute.xlu0 %506
  %509 = vset.pattern.permute.xlu0 64
  %510 = vperm.xlu0 %509, %v318
  %v511 = vpop.permute.xlu0 %510
  %v513 = vmul.f32 %v152, %v507
  %v514 = vmul.f32 %v154, %v507
  %v515 = vmul.f32 %v158, %v511
  %v516 = vmul.f32 %v160, %v511
  %517 = vset.pattern.permute.xlu0 65
  %518 = vperm.xlu0 %517, %v317
  %v519 = vpop.permute.xlu0 %518
  %521 = vset.pattern.permute.xlu0 65
  %522 = vperm.xlu0 %521, %v318
  %v523 = vpop.permute.xlu0 %522
  %v525 = vmul.f32 %v294, %v519
  %v526 = vmul.f32 %v296, %v519
  %v527 = vmul.f32 %v300, %v523
  %v528 = vmul.f32 %v302, %v523
  %v529 = vadd.f32 %v513, %v525
  %v530 = vadd.f32 %v514, %v526
  %v531 = vadd.f32 %v515, %v527
  %v532 = vadd.f32 %v516, %v528
  %533 = vset.pattern.permute.xlu0 66
  %534 = vperm.xlu0 %533, %v317
  %v535 = vpop.permute.xlu0 %534
  %537 = vset.pattern.permute.xlu0 66
  %538 = vperm.xlu0 %537, %v318
  %v539 = vpop.permute.xlu0 %538
  %v541 = vadd.f32 %v529, %v535
  %v542 = vadd.f32 %v530, %v535
  %v543 = vadd.f32 %v531, %v539
  %v544 = vadd.f32 %v532, %v539
  %546 = vset.pattern.permute.xlu0 0
  %547 = vperm.xlu0 %546, %v502
  %v548 = vpop.permute.xlu0 %547
  %551 = vset.pattern.permute.xlu0 0
  %552 = vperm.xlu0 %551, %v504
  %v553 = vpop.permute.xlu0 %552
  %v555 = vmul.f32 %v541, %v548
  %v556 = vmul.f32 %v542, %v548
  %v557 = vmul.f32 %v543, %v553
  %v558 = vmul.f32 %v544, %v553
  %559 = vst [vmem:[%s4] sm:$0xff] %v555
  %560 = vst [vmem:[%s4 + $0x8] sm:$0xff] %v556
  %561 = vst [vmem:[%s4 + $0x10] sm:$0xff] %v557
  %562 = vst [vmem:[%s4 + $0x18] sm:$0xff] %v558
  // Predicated region
  $region18: #{repmlp_forward.1} parent=0 // pred_check
    _
  $region19: #{repmlp_forward.1} parent=0 // pred_check_branch
    %564 = sbr.rel (0) target = $region21
  $region20: #{repmlp_forward.1} parent=0 // pred_region
    _
  $region21: #{repmlp_forward.1} parent=0 // pred_fallthru
    _
  // Predicated region
  $region22: #{repmlp_forward.1} parent=0 // pred_check
    _
  $region23: #{repmlp_forward.1} parent=0 // pred_check_branch
    %566 = sbr.rel (0) target = $region25
  $region24: #{repmlp_forward.1} parent=0 // pred_region
    _
  $region25: #{repmlp_forward.1} parent=0 // pred_fallthru
    _

</llo_original>
